<compile_context>
chip_gen: v6e
topology: v6e:2x2x1
jax: 0.10.0
libtpu: 0.0.40
codegen_flags: <defaults>
</compile_context>

<pallas_src>
import functools

import jax
import jax.numpy as jnp
from jax import lax
from jax.experimental import pallas as pl
from jax.experimental.pallas import tpu as pltpu


_LANE = 128
_TARGET_BYTES = 1 << 20  # ~1 MiB per (TB, C, TR) block


# ----------------------------------------------------------------------------
# Pallas kernel: per-voxel LayerNorm over channels.
# ----------------------------------------------------------------------------
def _chan_ln_kernel(x_ref, o_ref, *, eps, inv_c, chunk, n_chunks):
    # x_ref / o_ref: (TB, C, TR) — channels on the sublane axis, a lane-dense slab
    # of flattened spatial positions on the lane axis.  Process TR in `chunk`-lane
    # pieces so per-chunk intermediates stay in vregs.
    def body(j, carry):
        start = pl.multiple_of(j * chunk, chunk)
        x = x_ref[:, :, pl.ds(start, chunk)].astype(jnp.float32)   # (TB, C, chunk)
        # Shifted two-pass mean/variance over the channel (sublane) axis.
        mean = jnp.sum(x, axis=1, keepdims=True) * inv_c            # (TB, 1, chunk)
        xc = x - mean
        var = jnp.sum(xc * xc, axis=1, keepdims=True) * inv_c       # (TB, 1, chunk)
        y = xc * lax.rsqrt(var + eps)
        o_ref[:, :, pl.ds(start, chunk)] = y.astype(o_ref.dtype)
        return carry

    if n_chunks == 1:
        body(0, 0)
    else:
        lax.fori_loop(0, n_chunks, body, 0, unroll=(n_chunks <= 8))


# ----------------------------------------------------------------------------
# Tile planning (byte-budgeted, sublane-padding aware)
# ----------------------------------------------------------------------------
def _round_up(x, m):
    return -(-x // m) * m


def _round_down(x, m):
    return (x // m) * m


def _sublane(itemsize):
    # Sub-32-bit dtypes pack along sublanes: f32 -> 8, bf16 -> 16, int8/fp8 -> 32.
    return {4: 8, 2: 16, 1: 32}.get(itemsize, 8)


def _plan_tiles(B, C, R, itemsize):
    """Pick (TB, TR) so a block is ~_TARGET_BYTES of VMEM and the grid has >=2 steps."""
    pad_c = _round_up(C, _sublane(itemsize))
    per_lane_bytes = pad_c * itemsize

    if R < _LANE:
        tr = R  # full (possibly ragged) extent; legal full-dim block
    else:
        r_up = _round_up(R, _LANE)
        tr = _round_down(_TARGET_BYTES // per_lane_bytes, _LANE)
        # Floor: keep a reasonable minimum lane width, but never exceed ~2 MiB/block
        # (so huge-C shapes stay within v5e's 16 MiB scoped-VMEM default once
        # double-buffered in+out).
        floor = _LANE
        for cand in (512, 256):
            if cand * per_lane_bytes <= 2 * _TARGET_BYTES:
                floor = cand
                break
        tr = min(max(tr, floor), r_up)

    grid_r = -(-R // tr)

    # Block the batch axis when a single R-block per batch is small.
    if grid_r == 1:
        tb = max(1, _TARGET_BYTES // (per_lane_bytes * tr))
        tb = min(tb, B)
    else:
        tb = 1
    grid_b = -(-B // tb)

    # v7x megacore: guarantee >= 2 grid steps when the shape allows so both
    # TensorCores share the work.
    if grid_b * grid_r == 1:
        if R >= 2 * _LANE:
            tr = _round_up(-(-R // 2), _LANE)
        elif B >= 2:
            tb = -(-B // 2)
    return tb, tr


def _pick_chunk(tr):
    if tr <= 1024:
        return tr
    for c in (1024, 512, 256, 128):
        if tr % c == 0:
            return c
    return tr


# ----------------------------------------------------------------------------
# Wrapper
# ----------------------------------------------------------------------------
@functools.partial(jax.jit, static_argnames=("eps",))
def channelwise_layer_norm(x, *, eps=1e-5):
    """x: (B, C, D, H, W) -> LayerNorm over C at every voxel.  Same shape/dtype out."""
    B, C, D, H, W = x.shape
    R = D * H * W
    xr = x.reshape(B, C, R)  # contiguous view of NCDHW — no transpose, no padding

    itemsize = jnp.dtype(x.dtype).itemsize
    tb, tr = _plan_tiles(B, C, R, itemsize)
    chunk = _pick_chunk(tr)
    n_chunks = tr // chunk

    kernel = functools.partial(
        _chan_ln_kernel, eps=float(eps), inv_c=1.0 / C, chunk=chunk, n_chunks=n_chunks)

    out = pl.pallas_call(
        kernel,
        out_shape=jax.ShapeDtypeStruct((B, C, R), x.dtype),
        grid_spec=pltpu.PrefetchScalarGridSpec(
            num_scalar_prefetch=0,
            grid=(pl.cdiv(B, tb), pl.cdiv(R, tr)),
            in_specs=[pl.BlockSpec((tb, C, tr), lambda b, r: (b, 0, r))],
            out_specs=pl.BlockSpec((tb, C, tr), lambda b, r: (b, 0, r)),
        ),
        compiler_params=pltpu.CompilerParams(
            dimension_semantics=("parallel", "parallel")),
    )(xr)

    return out.reshape(B, C, D, H, W)


# ----------------------------------------------------------------------------
# Pure-JAX reference (two-pass, matches PyTorch LayerNorm numerics)
# ----------------------------------------------------------------------------
def reference(x, eps=1e-5):
    xf = x.astype(jnp.float32)
    mean = xf.mean(axis=1, keepdims=True)
    var = ((xf - mean) ** 2).mean(axis=1, keepdims=True)
    return ((xf - mean) * lax.rsqrt(var + eps)).astype(x.dtype)


if __name__ == "__main__":
    key = jax.random.PRNGKey(0)
    k1, k2, k3 = jax.random.split(key, 3)

    # Case 1: batch=2, channels=4, spatial 16^3 (R=4096; plan -> TB=2, TR=2048, grid (1,2)).
    x1 = jax.random.normal(k1, (2, 4, 16, 16, 16), jnp.float32) + 3.0
    out1 = jax.block_until_ready(channelwise_layer_norm(x1))
    assert out1.shape == x1.shape, out1.shape
    ref1 = reference(x1)
    err1 = float(jnp.max(jnp.abs(out1 - ref1)))
    assert jnp.allclose(out1, ref1, rtol=1e-4, atol=1e-5), err1

    # Case 2: ragged spatial extent (R=210) — no pad/slice, masked edge block.
    x2 = jax.random.normal(k2, (1, 8, 5, 6, 7), jnp.float32)
    out2 = jax.block_until_ready(channelwise_layer_norm(x2))
    assert out2.shape == x2.shape, out2.shape
    ref2 = reference(x2)
    err2 = float(jnp.max(jnp.abs(out2 - ref2)))
    assert jnp.allclose(out2, ref2, rtol=1e-4, atol=1e-5), err2

    # Case 3: bf16 input, batch-blocked path (small per-batch R).
    x3 = jax.random.normal(k3, (4, 4, 8, 8, 8), jnp.bfloat16)
    out3 = jax.block_until_ready(channelwise_layer_norm(x3))
    assert out3.shape == x3.shape and out3.dtype == x3.dtype
    ref3 = reference(x3)
    err3 = float(jnp.max(jnp.abs(out3.astype(jnp.float32) - ref3.astype(jnp.float32))))
    assert err3 < 5e-2, err3

    print("KERNEL_OK")
</pallas_src>

<mosaic_0001>
module attributes {stable_mosaic.version = 11 : i64} {
  func.func @_chan_ln_kernel(%arg0: i32, %arg1: i32, %arg2: memref<2x4x2048xf32, #tpu.memory_space<vmem>>, %arg3: memref<2x4x2048xf32, #tpu.memory_space<vmem>>) attributes {dimension_semantics = [#tpu.dimension_semantics<parallel>, #tpu.dimension_semantics<parallel>], iteration_bounds = array<i64: 1, 2>, scalar_prefetch = 0 : i64, scratch_operands = 0 : i64, tpu.core_type = #tpu.core_type<tc>, window_params = [{transform_indices = @transform_0, window_bounds = array<i64: 2, 4, 2048>}, {transform_indices = @transform_1, window_bounds = array<i64: 2, 4, 2048>}]} {
    %c0_i32 = arith.constant 0 : i32
    %c1024_i32 = arith.constant 1024 : i32
    %0 = arith.muli %c0_i32, %c1024_i32 : i32
    %1 = tpu.assume_multiple %0, 1024 : i32
    %c0 = arith.constant 0 : index
    %c0_0 = arith.constant 0 : index
    %2 = arith.index_cast %1 : i32 to index
    %3 = vector.load %arg2[%c0, %c0_0, %2] : memref<2x4x2048xf32, #tpu.memory_space<vmem>>, vector<2x4x1024xf32>
    %cst = arith.constant dense<0.000000e+00> : vector<2x1024xf32>
    %4 = vector.multi_reduction <add>, %3, %cst [1] : vector<2x4x1024xf32> to vector<2x1024xf32>
    %5 = vector.shape_cast %4 : vector<2x1024xf32> to vector<2x1x1024xf32>
    %cst_1 = arith.constant 2.500000e-01 : f32
    %6 = vector.broadcast %cst_1 : f32 to vector<2x1x1024xf32>
    %7 = arith.mulf %5, %6 : vector<2x1x1024xf32>
    %8 = vector.broadcast %7 : vector<2x1x1024xf32> to vector<2x4x1024xf32>
    %9 = arith.subf %3, %8 : vector<2x4x1024xf32>
    %10 = arith.mulf %9, %9 : vector<2x4x1024xf32>
    %cst_2 = arith.constant dense<0.000000e+00> : vector<2x1024xf32>
    %11 = vector.multi_reduction <add>, %10, %cst_2 [1] : vector<2x4x1024xf32> to vector<2x1024xf32>
    %12 = vector.shape_cast %11 : vector<2x1024xf32> to vector<2x1x1024xf32>
    %cst_3 = arith.constant 2.500000e-01 : f32
    %13 = vector.broadcast %cst_3 : f32 to vector<2x1x1024xf32>
    %14 = arith.mulf %12, %13 : vector<2x1x1024xf32>
    %cst_4 = arith.constant 9.99999974E-6 : f32
    %15 = vector.broadcast %cst_4 : f32 to vector<2x1x1024xf32>
    %16 = arith.addf %14, %15 : vector<2x1x1024xf32>
    %17 = math.rsqrt %16 : vector<2x1x1024xf32>
    %18 = vector.broadcast %17 : vector<2x1x1024xf32> to vector<2x4x1024xf32>
    %19 = arith.mulf %9, %18 : vector<2x4x1024xf32>
    %c0_5 = arith.constant 0 : index
    %c0_6 = arith.constant 0 : index
    %20 = arith.index_cast %1 : i32 to index
    %21 = vector.load %arg3[%c0_5, %c0_6, %20] : memref<2x4x2048xf32, #tpu.memory_space<vmem>>, vector<2x4x1024xf32>
    tpu.vector_store %arg3[%c0_5, %c0_6, %20], %19 {strides = array<i32>} : memref<2x4x2048xf32, #tpu.memory_space<vmem>>, vector<2x4x1024xf32>,
    %c1_i32 = arith.constant 1 : i32
    %c1024_i32_7 = arith.constant 1024 : i32
    %22 = arith.muli %c1_i32, %c1024_i32_7 : i32
    %23 = tpu.assume_multiple %22, 1024 : i32
    %c0_8 = arith.constant 0 : index
    %c0_9 = arith.constant 0 : index
    %24 = arith.index_cast %23 : i32 to index
    %25 = vector.load %arg2[%c0_8, %c0_9, %24] : memref<2x4x2048xf32, #tpu.memory_space<vmem>>, vector<2x4x1024xf32>
    %cst_10 = arith.constant dense<0.000000e+00> : vector<2x1024xf32>
    %26 = vector.multi_reduction <add>, %25, %cst_10 [1] : vector<2x4x1024xf32> to vector<2x1024xf32>
    %27 = vector.shape_cast %26 : vector<2x1024xf32> to vector<2x1x1024xf32>
    %cst_11 = arith.constant 2.500000e-01 : f32
    %28 = vector.broadcast %cst_11 : f32 to vector<2x1x1024xf32>
    %29 = arith.mulf %27, %28 : vector<2x1x1024xf32>
    %30 = vector.broadcast %29 : vector<2x1x1024xf32> to vector<2x4x1024xf32>
    %31 = arith.subf %25, %30 : vector<2x4x1024xf32>
    %32 = arith.mulf %31, %31 : vector<2x4x1024xf32>
    %cst_12 = arith.constant dense<0.000000e+00> : vector<2x1024xf32>
    %33 = vector.multi_reduction <add>, %32, %cst_12 [1] : vector<2x4x1024xf32> to vector<2x1024xf32>
    %34 = vector.shape_cast %33 : vector<2x1024xf32> to vector<2x1x1024xf32>
    %cst_13 = arith.constant 2.500000e-01 : f32
    %35 = vector.broadcast %cst_13 : f32 to vector<2x1x1024xf32>
    %36 = arith.mulf %34, %35 : vector<2x1x1024xf32>
    %cst_14 = arith.constant 9.99999974E-6 : f32
    %37 = vector.broadcast %cst_14 : f32 to vector<2x1x1024xf32>
    %38 = arith.addf %36, %37 : vector<2x1x1024xf32>
    %39 = math.rsqrt %38 : vector<2x1x1024xf32>
    %40 = vector.broadcast %39 : vector<2x1x1024xf32> to vector<2x4x1024xf32>
    %41 = arith.mulf %31, %40 : vector<2x4x1024xf32>
    %c0_15 = arith.constant 0 : index
    %c0_16 = arith.constant 0 : index
    %42 = arith.index_cast %23 : i32 to index
    %43 = vector.load %arg3[%c0_15, %c0_16, %42] : memref<2x4x2048xf32, #tpu.memory_space<vmem>>, vector<2x4x1024xf32>
    tpu.vector_store %arg3[%c0_15, %c0_16, %42], %41 {strides = array<i32>} : memref<2x4x2048xf32, #tpu.memory_space<vmem>>, vector<2x4x1024xf32>,
    %c2_i32 = arith.constant 2 : i32
    return
  }
  func.func @transform_0(%arg0: i32, %arg1: i32) -> (i32, i32, i32) {
    %c0_i32 = arith.constant 0 : i32
    %c0_i32_0 = arith.constant 0 : i32
    return %arg0, %c0_i32, %arg1 : i32, i32, i32
  }
  func.func @transform_1(%arg0: i32, %arg1: i32) -> (i32, i32, i32) {
    %c0_i32 = arith.constant 0 : i32
    %c0_i32_0 = arith.constant 0 : i32
    return %arg0, %c0_i32, %arg1 : i32, i32, i32
  }
}

</mosaic_0001>

<llo_original>
// kernel: channelwise_layer_norm.1
$region0: #{channelwise_layer_norm.1}
  #allocation0 [shape = 'u32[]', space=smem, size = 0x4, offset = 0x4, fixed_abs, tag = 'smem constant byte address 0x4 - core index']
  #allocation1 [shape = 'u32[144,128]{1,0:T(1,128)}', space=vmem, size = 0x12000, scoped, tag = 'internal scratch']
  %s0 = inlined_call_operand.vmem [shape: f32[2,4,4096], index: 0, kind: input, shape index: {}]
  %s1 = inlined_call_operand.vmem [shape: f32[2,4,4096], index: 1, kind: output, shape index: {}]
  %s2 = sld [smem:[#allocation0]]
  $region79: #{channelwise_layer_norm.1} parent=0
    _
  %s4 = ssub.s32 1, %s2
  %s5 = scalar_select 0, %s4, %s2
  $region1: #{channelwise_layer_norm.1} parent=0
    #allocation2 [shape = 'u8[131072]{0}', space=vmem, size = 0x20000, scoped, tag = 'input window, operand 0']
    #allocation3 [shape = 'u8[131072]{0}', space=vmem, size = 0x20000, scoped, tag = 'output window, operand 0']
    loop: start=0, step=1, limit=4
    $region2: #{channelwise_layer_norm.1} parent=1 // loop_pre_header
      _
    $region3: #{channelwise_layer_norm.1} parent=1 // loop_header
      %s7 = sphi 0, %s11
      %p8 = scmp.ge.s32.totalorder %s7, 4
      %s14 = sphi 0, %s26
      %s15 = sphi 0, %s22
      %s16 = sphi 0, %s14
      %s17 = sphi 0, %s15
      %s18 = sphi 0, %s16
      %s19 = sphi 0, %s17
      %s31 = sphi 0, %s33
      %s34 = sphi 0, %s31
      %s35 = sphi 0, %s34
      %s51 = sphi 0, %s35
      %s59 = sphi 0, %s61
      %s62 = sphi 0, %s59
      %s63 = sphi 0, %s62
      %s79 = sphi 0, %s63
    $region4: #{channelwise_layer_norm.1} parent=1 // loop_header_branch
      %10 = sbr.rel (%p8) target = $region8
    $region5: #{channelwise_layer_norm.1} parent=1 // loop_body
      %s12 = ssub.s32 %s7, 1
      %s13 = ssub.s32 %s7, 2
      %s20 = sadd.s32 1, %s15
      %p21 = scmp.ge.s32.totalorder %s20, 2
      %s22 = scalar_select %p21, 0, %s20
      %s23 = sadd.s32 1, %s14
      %s24 = scalar_select %p21, %s23, %s14
      %p25 = scmp.ge.s32.totalorder %s24, 1
      %s26 = scalar_select %p25, 0, %s24
      %s27 = ssub.s32 %s14, %s26
      %s28 = ssub.s32 %s15, %s22
      %s29 = sor.u32 %s27, %s28
      %p30 = scmp.eq.s32.totalorder %s29, 0
      %s32 = sadd.s32 %s31, 1
      %s33 = scalar_select %p30, %s31, %s32
      %p36 = pneg %p30
      %p37 = scmp.eq.s32.totalorder %s7, 1
      %p38 = por %p36, %p37
      %p39 = scmp.ne.s32.totalorder %s31, %s34
      %p40 = scmp.eq.s32.totalorder %s7, 0
      %p41 = por %p39, %p40
      %p42 = scmp.ne.s32.totalorder %s31, %s34
      %p43 = scmp.eq.s32.totalorder %s12, 1
      %p44 = por %p42, %p43
      %p45 = scmp.ne.s32.totalorder %s34, %s35
      %p46 = scmp.eq.s32.totalorder %s12, 0
      %p47 = por %p45, %p46
      %p48 = scmp.ne.s32.totalorder %s34, %s35
      %p49 = scmp.eq.s32.totalorder %s13, 1
      %p50 = por %p48, %p49
      %p52 = scmp.ne.s32.totalorder %s35, %s51
      %p53 = scmp.eq.s32.totalorder %s13, 0
      %p54 = por %p52, %p53
      %s55 = ssub.s32 %s14, %s26
      %s56 = ssub.s32 %s15, %s22
      %s57 = sor.u32 %s55, %s56
      %p58 = scmp.eq.s32.totalorder %s57, 0
      %s60 = sadd.s32 %s59, 1
      %s61 = scalar_select %p58, %s59, %s60
      %p64 = pneg %p58
      %p65 = scmp.eq.s32.totalorder %s7, 1
      %p66 = por %p64, %p65
      %p67 = scmp.ne.s32.totalorder %s59, %s62
      %p68 = scmp.eq.s32.totalorder %s7, 0
      %p69 = por %p67, %p68
      %p70 = scmp.ne.s32.totalorder %s59, %s62
      %p71 = scmp.eq.s32.totalorder %s12, 1
      %p72 = por %p70, %p71
      %p73 = scmp.ne.s32.totalorder %s62, %s63
      %p74 = scmp.eq.s32.totalorder %s12, 0
      %p75 = por %p73, %p74
      %p76 = scmp.ne.s32.totalorder %s62, %s63
      %p77 = scmp.eq.s32.totalorder %s13, 1
      %p78 = por %p76, %p77
      %p80 = scmp.ne.s32.totalorder %s63, %s79
      %p81 = scmp.eq.s32.totalorder %s13, 0
      %p82 = por %p80, %p81
      %p83 = scmp.le.s32.totalorder 1, %s7
      %p84 = scmp.lt.s32.totalorder %s7, 3
      %p85 = pnand %p83, %p84
      %p86 = pneg %p85
      // Predicated region
      $region9: #{channelwise_layer_norm.1} parent=5 // pred_check
        _
      $region10: #{channelwise_layer_norm.1} parent=5 // pred_check_branch
        %88 = sbr.rel (%p85) target = $region12
      $region11: #{channelwise_layer_norm.1} parent=5 // pred_region
        %s89 = ssub.s32 %s7, 1
      $region12: #{channelwise_layer_norm.1} parent=5 // pred_fallthru
        _
      %p90 = scmp.lt.s32.totalorder %s7, 2
      // Predicated region
      $region13: #{channelwise_layer_norm.1} parent=5 // pred_check
        %p91 = pneg %p90
      $region14: #{channelwise_layer_norm.1} parent=5 // pred_check_branch
        %93 = sbr.rel (%p91) target = $region16
      $region15: #{channelwise_layer_norm.1} parent=5 // pred_region
        // Predicated region
        $region17: #{channelwise_layer_norm.1} parent=15 // pred_check
          %p94 = pneg %p41
        $region18: #{channelwise_layer_norm.1} parent=15 // pred_check_branch
          %96 = sbr.rel (%p94) target = $region20
        $region19: #{channelwise_layer_norm.1} parent=15 // pred_region
          %s97 = sand.u32 %s31, 1
          %s98 = sand.u32 %s31, 1
          %s99 = smul.addr %s98, 128
          %s100 = scalar_lea.vmem [#allocation2], %s99
          %s101 = smul.u32 2, %s14
          %s102 = smul.u32 16, %s15
          %s103 = smul.addr %s101, 32
          %s104 = sadd.s32 %s102, %s103
          %s105 = smul.addr %s104, 4
          %s106 = scalar_lea.vmem %s0, %s105
          // Predicated region
          $region21: #{channelwise_layer_norm.1} parent=19 // pred_check
            _
          $region22: #{channelwise_layer_norm.1} parent=19 // pred_check_branch
            %108 = sbr.rel (0) target = $region24
          $region23: #{channelwise_layer_norm.1} parent=19 // pred_region
            // Predicated region
            $region25: #{channelwise_layer_norm.1} parent=23 // pred_check
              _
            $region26: #{channelwise_layer_norm.1} parent=23 // pred_check_branch
              %110 = sbr.rel (0) target = $region28
            $region27: #{channelwise_layer_norm.1} parent=23 // pred_region
              loop: start=0, step=1, limit=1
              $region29: #{channelwise_layer_norm.1} parent=27 // loop_pre_header
                _
              $region30: #{channelwise_layer_norm.1} parent=27 // loop_header
                %s112 = sphi 0, %s116
                %p113 = scmp.ge.s32.totalorder %s112, 1
                %s117 = sphi %s106, %s106
                %s118 = sphi %s100, %s100
              $region31: #{channelwise_layer_norm.1} parent=27 // loop_header_branch
                %115 = sbr.rel (%p113) target = $region35
              $region32: #{channelwise_layer_norm.1} parent=27 // loop_body
                %v119 = vld [vmem:[%s117] sm:$0xff]
                %120 = vst [vmem:[%s118] sm:$0xff] %v119
                %v121 = vld [vmem:[%s117 + $0x8] sm:$0xff]
                %122 = vst [vmem:[%s118 + $0x8] sm:$0xff] %v121
                %v123 = vld [vmem:[%s117 + $0x10] sm:$0xff]
                %124 = vst [vmem:[%s118 + $0x10] sm:$0xff] %v123
                %v125 = vld [vmem:[%s117 + $0x18] sm:$0xff]
                %126 = vst [vmem:[%s118 + $0x18] sm:$0xff] %v125
                %v127 = vld [vmem:[%s117 + $0x20] sm:$0xff]
                %128 = vst [vmem:[%s118 + $0x20] sm:$0xff] %v127
                %v129 = vld [vmem:[%s117 + $0x28] sm:$0xff]
                %130 = vst [vmem:[%s118 + $0x28] sm:$0xff] %v129
                %v131 = vld [vmem:[%s117 + $0x30] sm:$0xff]
                %132 = vst [vmem:[%s118 + $0x30] sm:$0xff] %v131
                %v133 = vld [vmem:[%s117 + $0x38] sm:$0xff]
                %134 = vst [vmem:[%s118 + $0x38] sm:$0xff] %v133
                %v135 = vld [vmem:[%s117 + $0x80] sm:$0xff]
                %136 = vst [vmem:[%s118 + $0x40] sm:$0xff] %v135
                %v137 = vld [vmem:[%s117 + $0x88] sm:$0xff]
                %138 = vst [vmem:[%s118 + $0x48] sm:$0xff] %v137
                %v139 = vld [vmem:[%s117 + $0x90] sm:$0xff]
                %140 = vst [vmem:[%s118 + $0x50] sm:$0xff] %v139
                %v141 = vld [vmem:[%s117 + $0x98] sm:$0xff]
                %142 = vst [vmem:[%s118 + $0x58] sm:$0xff] %v141
                %v143 = vld [vmem:[%s117 + $0xa0] sm:$0xff]
                %144 = vst [vmem:[%s118 + $0x60] sm:$0xff] %v143
                %v145 = vld [vmem:[%s117 + $0xa8] sm:$0xff]
                %146 = vst [vmem:[%s118 + $0x68] sm:$0xff] %v145
                %v147 = vld [vmem:[%s117 + $0xb0] sm:$0xff]
                %148 = vst [vmem:[%s118 + $0x70] sm:$0xff] %v147
                %v149 = vld [vmem:[%s117 + $0xb8] sm:$0xff]
                %150 = vst [vmem:[%s118 + $0x78] sm:$0xff] %v149
              $region33: #{channelwise_layer_norm.1} parent=27 // loop_footer
                %s116 = sadd.s32 1, %s112
              $region34: #{channelwise_layer_norm.1} parent=27 // loop_footer_branch
                %111 = sbr.rel target = $region30
              $region35: #{channelwise_layer_norm.1} parent=27 // loop_exit
                _
            $region28: #{channelwise_layer_norm.1} parent=23 // pred_fallthru
              _
            // Predicated region
            $region36: #{channelwise_layer_norm.1} parent=23 // pred_check
              _
            $region37: #{channelwise_layer_norm.1} parent=23 // pred_check_branch
              %152 = sbr.rel target = $region39
            $region38: #{channelwise_layer_norm.1} parent=23 // pred_region
              _
            $region39: #{channelwise_layer_norm.1} parent=23 // pred_fallthru
              _
          $region24: #{channelwise_layer_norm.1} parent=19 // pred_fallthru
            _
          %153 = vnop
        $region20: #{channelwise_layer_norm.1} parent=15 // pred_fallthru
          _
      $region16: #{channelwise_layer_norm.1} parent=5 // pred_fallthru
        _
      %p154 = scmp.le.s32.totalorder 1, %s7
      %p155 = scmp.lt.s32.totalorder %s7, 3
      %p156 = pnand %p154, %p155
      %p157 = pneg %p156
      // Predicated region
      $region40: #{channelwise_layer_norm.1} parent=5 // pred_check
        _
      $region41: #{channelwise_layer_norm.1} parent=5 // pred_check_branch
        %159 = sbr.rel (%p156) target = $region43
      $region42: #{channelwise_layer_norm.1} parent=5 // pred_region
        %s160 = ssub.s32 %s7, 1
        %s161 = sand.u32 %s34, 1
        %s162 = sand.u32 %s34, 1
        %s163 = smul.addr %s162, 128
        %s164 = scalar_lea.vmem [#allocation2], %s163
        // Predicated region
        $region44: #{channelwise_layer_norm.1} parent=42 // pred_check
          %p165 = pneg %p47
        $region45: #{channelwise_layer_norm.1} parent=42 // pred_check_branch
          %167 = sbr.rel (%p165) target = $region47
        $region46: #{channelwise_layer_norm.1} parent=42 // pred_region
          _
        $region47: #{channelwise_layer_norm.1} parent=42 // pred_fallthru
          _
        %s168 = sand.u32 %s34, 1
        %s169 = sand.u32 %s34, 1
        %s170 = smul.addr %s169, 128
        %s171 = scalar_lea.vmem [#allocation2], %s170
        %p172 = pneg %p47
        %p173 = pneg %p44
        %p174 = pneg %p75
        %p175 = pneg %p72
        %s176 = sand.u32 %s62, 1
        %s177 = sand.u32 %s62, 1
        %s178 = smul.addr %s177, 128
        %s179 = scalar_lea.vmem [#allocation3], %s178
        %s180 = smul.u32 2, %s16
        %s181 = smul.u32 16, %s17
        %s182 = smul.u32 2, %s16
        %s183 = smul.u32 16, %s17
        %v184 = vld [vmem:[%s164] sm:$0xff]
        %v185 = vld [vmem:[%s164 + $0x8] sm:$0xff]
        %v186 = vld [vmem:[%s164 + $0x10] sm:$0xff]
        %v187 = vld [vmem:[%s164 + $0x18] sm:$0xff]
        %v188 = vld [vmem:[%s164 + $0x40] sm:$0xff]
        %v189 = vld [vmem:[%s164 + $0x48] sm:$0xff]
        %v190 = vld [vmem:[%s164 + $0x50] sm:$0xff]
        %v191 = vld [vmem:[%s164 + $0x58] sm:$0xff]
        %v200 = vcombine.high %v184, %v184
        %v201 = vcombine.high %v185, %v185
        %v202 = vcombine.high %v186, %v186
        %v203 = vcombine.high %v187, %v187
        %v204 = vcombine.high %v188, %v188
        %v205 = vcombine.high %v189, %v189
        %v206 = vcombine.high %v190, %v190
        %v207 = vcombine.high %v191, %v191
        %vm216 = vcmask 1043456
        %v217 = vsel %vm216, %v184, 0.0
        %v218 = vrot.slane %v217, 4
        %v219 = vadd.f32 %v217, %v218
        %v220 = vrot.slane %v219, 2
        %v221 = vadd.f32 %v219, %v220
        %v222 = vrot.slane %v221, 1
        %v223 = vadd.f32 %v221, %v222
        %v224 = vsel %vm216, %v200, 0.0
        %v225 = vrot.slane %v224, 4
        %v226 = vadd.f32 %v224, %v225
        %v227 = vrot.slane %v226, 2
        %v228 = vadd.f32 %v226, %v227
        %v229 = vrot.slane %v228, 1
        %v230 = vadd.f32 %v228, %v229
        %v231 = vsel %vm216, %v185, 0.0
        %v232 = vrot.slane %v231, 4
        %v233 = vadd.f32 %v231, %v232
        %v234 = vrot.slane %v233, 2
        %v235 = vadd.f32 %v233, %v234
        %v236 = vrot.slane %v235, 1
        %v237 = vadd.f32 %v235, %v236
        %v238 = vsel %vm216, %v201, 0.0
        %v239 = vrot.slane %v238, 4
        %v240 = vadd.f32 %v238, %v239
        %v241 = vrot.slane %v240, 2
        %v242 = vadd.f32 %v240, %v241
        %v243 = vrot.slane %v242, 1
        %v244 = vadd.f32 %v242, %v243
        %v245 = vsel %vm216, %v186, 0.0
        %v246 = vrot.slane %v245, 4
        %v247 = vadd.f32 %v245, %v246
        %v248 = vrot.slane %v247, 2
        %v249 = vadd.f32 %v247, %v248
        %v250 = vrot.slane %v249, 1
        %v251 = vadd.f32 %v249, %v250
        %v252 = vsel %vm216, %v202, 0.0
        %v253 = vrot.slane %v252, 4
        %v254 = vadd.f32 %v252, %v253
        %v255 = vrot.slane %v254, 2
        %v256 = vadd.f32 %v254, %v255
        %v257 = vrot.slane %v256, 1
        %v258 = vadd.f32 %v256, %v257
        %v259 = vsel %vm216, %v187, 0.0
        %v260 = vrot.slane %v259, 4
        %v261 = vadd.f32 %v259, %v260
        %v262 = vrot.slane %v261, 2
        %v263 = vadd.f32 %v261, %v262
        %v264 = vrot.slane %v263, 1
        %v265 = vadd.f32 %v263, %v264
        %v266 = vsel %vm216, %v203, 0.0
        %v267 = vrot.slane %v266, 4
        %v268 = vadd.f32 %v266, %v267
        %v269 = vrot.slane %v268, 2
        %v270 = vadd.f32 %v268, %v269
        %v271 = vrot.slane %v270, 1
        %v272 = vadd.f32 %v270, %v271
        %v273 = vsel %vm216, %v188, 0.0
        %v274 = vrot.slane %v273, 4
        %v275 = vadd.f32 %v273, %v274
        %v276 = vrot.slane %v275, 2
        %v277 = vadd.f32 %v275, %v276
        %v278 = vrot.slane %v277, 1
        %v279 = vadd.f32 %v277, %v278
        %v280 = vsel %vm216, %v204, 0.0
        %v281 = vrot.slane %v280, 4
        %v282 = vadd.f32 %v280, %v281
        %v283 = vrot.slane %v282, 2
        %v284 = vadd.f32 %v282, %v283
        %v285 = vrot.slane %v284, 1
        %v286 = vadd.f32 %v284, %v285
        %v287 = vsel %vm216, %v189, 0.0
        %v288 = vrot.slane %v287, 4
        %v289 = vadd.f32 %v287, %v288
        %v290 = vrot.slane %v289, 2
        %v291 = vadd.f32 %v289, %v290
        %v292 = vrot.slane %v291, 1
        %v293 = vadd.f32 %v291, %v292
        %v294 = vsel %vm216, %v205, 0.0
        %v295 = vrot.slane %v294, 4
        %v296 = vadd.f32 %v294, %v295
        %v297 = vrot.slane %v296, 2
        %v298 = vadd.f32 %v296, %v297
        %v299 = vrot.slane %v298, 1
        %v300 = vadd.f32 %v298, %v299
        %v301 = vsel %vm216, %v190, 0.0
        %v302 = vrot.slane %v301, 4
        %v303 = vadd.f32 %v301, %v302
        %v304 = vrot.slane %v303, 2
        %v305 = vadd.f32 %v303, %v304
        %v306 = vrot.slane %v305, 1
        %v307 = vadd.f32 %v305, %v306
        %v308 = vsel %vm216, %v206, 0.0
        %v309 = vrot.slane %v308, 4
        %v310 = vadd.f32 %v308, %v309
        %v311 = vrot.slane %v310, 2
        %v312 = vadd.f32 %v310, %v311
        %v313 = vrot.slane %v312, 1
        %v314 = vadd.f32 %v312, %v313
        %v315 = vsel %vm216, %v191, 0.0
        %v316 = vrot.slane %v315, 4
        %v317 = vadd.f32 %v315, %v316
        %v318 = vrot.slane %v317, 2
        %v319 = vadd.f32 %v317, %v318
        %v320 = vrot.slane %v319, 1
        %v321 = vadd.f32 %v319, %v320
        %v322 = vsel %vm216, %v207, 0.0
        %v323 = vrot.slane %v322, 4
        %v324 = vadd.f32 %v322, %v323
        %v325 = vrot.slane %v324, 2
        %v326 = vadd.f32 %v324, %v325
        %v327 = vrot.slane %v326, 1
        %v328 = vadd.f32 %v326, %v327
        %v329 = vmul.f32 %v223, 0.25
        %v330 = vmul.f32 %v230, 0.25
        %v331 = vmul.f32 %v237, 0.25
        %v332 = vmul.f32 %v244, 0.25
        %v333 = vmul.f32 %v251, 0.25
        %v334 = vmul.f32 %v258, 0.25
        %v335 = vmul.f32 %v265, 0.25
        %v336 = vmul.f32 %v272, 0.25
        %v337 = vmul.f32 %v279, 0.25
        %v338 = vmul.f32 %v286, 0.25
        %v339 = vmul.f32 %v293, 0.25
        %v340 = vmul.f32 %v300, 0.25
        %v341 = vmul.f32 %v307, 0.25
        %v342 = vmul.f32 %v314, 0.25
        %v343 = vmul.f32 %v321, 0.25
        %v344 = vmul.f32 %v328, 0.25
        %v361 = vcombine.low %v329, %v330
        %v362 = vcombine.low %v331, %v332
        %v363 = vcombine.low %v333, %v334
        %v364 = vcombine.low %v335, %v336
        %v365 = vcombine.low %v337, %v338
        %v366 = vcombine.low %v339, %v340
        %v367 = vcombine.low %v341, %v342
        %v368 = vcombine.low %v343, %v344
        %v377 = vsub.f32 %v184, %v361
        %v378 = vsub.f32 %v185, %v362
        %v379 = vsub.f32 %v186, %v363
        %v380 = vsub.f32 %v187, %v364
        %v381 = vsub.f32 %v188, %v365
        %v382 = vsub.f32 %v189, %v366
        %v383 = vsub.f32 %v190, %v367
        %v384 = vsub.f32 %v191, %v368
        %v385 = vmul.f32 %v377, %v377
        %v386 = vmul.f32 %v378, %v378
        %v387 = vmul.f32 %v379, %v379
        %v388 = vmul.f32 %v380, %v380
        %v389 = vmul.f32 %v381, %v381
        %v390 = vmul.f32 %v382, %v382
        %v391 = vmul.f32 %v383, %v383
        %v392 = vmul.f32 %v384, %v384
        %v401 = vcombine.high %v385, %v385
        %v402 = vcombine.high %v386, %v386
        %v403 = vcombine.high %v387, %v387
        %v404 = vcombine.high %v388, %v388
        %v405 = vcombine.high %v389, %v389
        %v406 = vcombine.high %v390, %v390
        %v407 = vcombine.high %v391, %v391
        %v408 = vcombine.high %v392, %v392
        %v417 = vsel %vm216, %v385, 0.0
        %v418 = vrot.slane %v417, 4
        %v419 = vadd.f32 %v417, %v418
        %v420 = vrot.slane %v419, 2
        %v421 = vadd.f32 %v419, %v420
        %v422 = vrot.slane %v421, 1
        %v423 = vadd.f32 %v421, %v422
        %v424 = vsel %vm216, %v401, 0.0
        %v425 = vrot.slane %v424, 4
        %v426 = vadd.f32 %v424, %v425
        %v427 = vrot.slane %v426, 2
        %v428 = vadd.f32 %v426, %v427
        %v429 = vrot.slane %v428, 1
        %v430 = vadd.f32 %v428, %v429
        %v431 = vsel %vm216, %v386, 0.0
        %v432 = vrot.slane %v431, 4
        %v433 = vadd.f32 %v431, %v432
        %v434 = vrot.slane %v433, 2
        %v435 = vadd.f32 %v433, %v434
        %v436 = vrot.slane %v435, 1
        %v437 = vadd.f32 %v435, %v436
        %v438 = vsel %vm216, %v402, 0.0
        %v439 = vrot.slane %v438, 4
        %v440 = vadd.f32 %v438, %v439
        %v441 = vrot.slane %v440, 2
        %v442 = vadd.f32 %v440, %v441
        %v443 = vrot.slane %v442, 1
        %v444 = vadd.f32 %v442, %v443
        %v445 = vsel %vm216, %v387, 0.0
        %v446 = vrot.slane %v445, 4
        %v447 = vadd.f32 %v445, %v446
        %v448 = vrot.slane %v447, 2
        %v449 = vadd.f32 %v447, %v448
        %v450 = vrot.slane %v449, 1
        %v451 = vadd.f32 %v449, %v450
        %v452 = vsel %vm216, %v403, 0.0
        %v453 = vrot.slane %v452, 4
        %v454 = vadd.f32 %v452, %v453
        %v455 = vrot.slane %v454, 2
        %v456 = vadd.f32 %v454, %v455
        %v457 = vrot.slane %v456, 1
        %v458 = vadd.f32 %v456, %v457
        %v459 = vsel %vm216, %v388, 0.0
        %v460 = vrot.slane %v459, 4
        %v461 = vadd.f32 %v459, %v460
        %v462 = vrot.slane %v461, 2
        %v463 = vadd.f32 %v461, %v462
        %v464 = vrot.slane %v463, 1
        %v465 = vadd.f32 %v463, %v464
        %v466 = vsel %vm216, %v404, 0.0
        %v467 = vrot.slane %v466, 4
        %v468 = vadd.f32 %v466, %v467
        %v469 = vrot.slane %v468, 2
        %v470 = vadd.f32 %v468, %v469
        %v471 = vrot.slane %v470, 1
        %v472 = vadd.f32 %v470, %v471
        %v473 = vsel %vm216, %v389, 0.0
        %v474 = vrot.slane %v473, 4
        %v475 = vadd.f32 %v473, %v474
        %v476 = vrot.slane %v475, 2
        %v477 = vadd.f32 %v475, %v476
        %v478 = vrot.slane %v477, 1
        %v479 = vadd.f32 %v477, %v478
        %v480 = vsel %vm216, %v405, 0.0
        %v481 = vrot.slane %v480, 4
        %v482 = vadd.f32 %v480, %v481
        %v483 = vrot.slane %v482, 2
        %v484 = vadd.f32 %v482, %v483
        %v485 = vrot.slane %v484, 1
        %v486 = vadd.f32 %v484, %v485
        %v487 = vsel %vm216, %v390, 0.0
        %v488 = vrot.slane %v487, 4
        %v489 = vadd.f32 %v487, %v488
        %v490 = vrot.slane %v489, 2
        %v491 = vadd.f32 %v489, %v490
        %v492 = vrot.slane %v491, 1
        %v493 = vadd.f32 %v491, %v492
        %v494 = vsel %vm216, %v406, 0.0
        %v495 = vrot.slane %v494, 4
        %v496 = vadd.f32 %v494, %v495
        %v497 = vrot.slane %v496, 2
        %v498 = vadd.f32 %v496, %v497
        %v499 = vrot.slane %v498, 1
        %v500 = vadd.f32 %v498, %v499
        %v501 = vsel %vm216, %v391, 0.0
        %v502 = vrot.slane %v501, 4
        %v503 = vadd.f32 %v501, %v502
        %v504 = vrot.slane %v503, 2
        %v505 = vadd.f32 %v503, %v504
        %v506 = vrot.slane %v505, 1
        %v507 = vadd.f32 %v505, %v506
        %v508 = vsel %vm216, %v407, 0.0
        %v509 = vrot.slane %v508, 4
        %v510 = vadd.f32 %v508, %v509
        %v511 = vrot.slane %v510, 2
        %v512 = vadd.f32 %v510, %v511
        %v513 = vrot.slane %v512, 1
        %v514 = vadd.f32 %v512, %v513
        %v515 = vsel %vm216, %v392, 0.0
        %v516 = vrot.slane %v515, 4
        %v517 = vadd.f32 %v515, %v516
        %v518 = vrot.slane %v517, 2
        %v519 = vadd.f32 %v517, %v518
        %v520 = vrot.slane %v519, 1
        %v521 = vadd.f32 %v519, %v520
        %v522 = vsel %vm216, %v408, 0.0
        %v523 = vrot.slane %v522, 4
        %v524 = vadd.f32 %v522, %v523
        %v525 = vrot.slane %v524, 2
        %v526 = vadd.f32 %v524, %v525
        %v527 = vrot.slane %v526, 1
        %v528 = vadd.f32 %v526, %v527
        %v529 = vmul.f32 %v423, 0.25
        %v530 = vmul.f32 %v430, 0.25
        %v531 = vmul.f32 %v437, 0.25
        %v532 = vmul.f32 %v444, 0.25
        %v533 = vmul.f32 %v451, 0.25
        %v534 = vmul.f32 %v458, 0.25
        %v535 = vmul.f32 %v465, 0.25
        %v536 = vmul.f32 %v472, 0.25
        %v537 = vmul.f32 %v479, 0.25
        %v538 = vmul.f32 %v486, 0.25
        %v539 = vmul.f32 %v493, 0.25
        %v540 = vmul.f32 %v500, 0.25
        %v541 = vmul.f32 %v507, 0.25
        %v542 = vmul.f32 %v514, 0.25
        %v543 = vmul.f32 %v521, 0.25
        %v544 = vmul.f32 %v528, 0.25
        %v545 = vadd.f32 %v529, 1e-05
        %v546 = vadd.f32 %v530, 1e-05
        %v547 = vadd.f32 %v531, 1e-05
        %v548 = vadd.f32 %v532, 1e-05
        %v549 = vadd.f32 %v533, 1e-05
        %v550 = vadd.f32 %v534, 1e-05
        %v551 = vadd.f32 %v535, 1e-05
        %v552 = vadd.f32 %v536, 1e-05
        %v553 = vadd.f32 %v537, 1e-05
        %v554 = vadd.f32 %v538, 1e-05
        %v555 = vadd.f32 %v539, 1e-05
        %v556 = vadd.f32 %v540, 1e-05
        %v557 = vadd.f32 %v541, 1e-05
        %v558 = vadd.f32 %v542, 1e-05
        %v559 = vadd.f32 %v543, 1e-05
        %v560 = vadd.f32 %v544, 1e-05
        %v561 = vrsqrt.pop %v545
        %v562 = vrsqrt.pop %v546
        %v563 = vrsqrt.pop %v547
        %v564 = vrsqrt.pop %v548
        %v565 = vrsqrt.pop %v549
        %v566 = vrsqrt.pop %v550
        %v567 = vrsqrt.pop %v551
        %v568 = vrsqrt.pop %v552
        %v569 = vrsqrt.pop %v553
        %v570 = vrsqrt.pop %v554
        %v571 = vrsqrt.pop %v555
        %v572 = vrsqrt.pop %v556
        %v573 = vrsqrt.pop %v557
        %v574 = vrsqrt.pop %v558
        %v575 = vrsqrt.pop %v559
        %v576 = vrsqrt.pop %v560
        %v593 = vcombine.low %v561, %v562
        %v594 = vcombine.low %v563, %v564
        %v595 = vcombine.low %v565, %v566
        %v596 = vcombine.low %v567, %v568
        %v597 = vcombine.low %v569, %v570
        %v598 = vcombine.low %v571, %v572
        %v599 = vcombine.low %v573, %v574
        %v600 = vcombine.low %v575, %v576
        %v609 = vmul.f32 %v377, %v593
        %v610 = vmul.f32 %v378, %v594
        %v611 = vmul.f32 %v379, %v595
        %v612 = vmul.f32 %v380, %v596
        %v613 = vmul.f32 %v381, %v597
        %v614 = vmul.f32 %v382, %v598
        %v615 = vmul.f32 %v383, %v599
        %v616 = vmul.f32 %v384, %v600
        %617 = vst [vmem:[%s179] sm:$0xff] %v609
        %618 = vst [vmem:[%s179 + $0x8] sm:$0xff] %v610
        %619 = vst [vmem:[%s179 + $0x10] sm:$0xff] %v611
        %620 = vst [vmem:[%s179 + $0x18] sm:$0xff] %v612
        %621 = vst [vmem:[%s179 + $0x40] sm:$0xff] %v613
        %622 = vst [vmem:[%s179 + $0x48] sm:$0xff] %v614
        %623 = vst [vmem:[%s179 + $0x50] sm:$0xff] %v615
        %624 = vst [vmem:[%s179 + $0x58] sm:$0xff] %v616
        %s625 = scalar_lea.vmem %s164, 32 [#allocation2]
        %v626 = vld [vmem:[%s625] sm:$0xff]
        %v627 = vld [vmem:[%s625 + $0x8] sm:$0xff]
        %v628 = vld [vmem:[%s625 + $0x10] sm:$0xff]
        %v629 = vld [vmem:[%s625 + $0x18] sm:$0xff]
        %v630 = vld [vmem:[%s625 + $0x40] sm:$0xff]
        %v631 = vld [vmem:[%s625 + $0x48] sm:$0xff]
        %v632 = vld [vmem:[%s625 + $0x50] sm:$0xff]
        %v633 = vld [vmem:[%s625 + $0x58] sm:$0xff]
        %v642 = vcombine.high %v626, %v626
        %v643 = vcombine.high %v627, %v627
        %v644 = vcombine.high %v628, %v628
        %v645 = vcombine.high %v629, %v629
        %v646 = vcombine.high %v630, %v630
        %v647 = vcombine.high %v631, %v631
        %v648 = vcombine.high %v632, %v632
        %v649 = vcombine.high %v633, %v633
        %v658 = vsel %vm216, %v626, 0.0
        %v659 = vrot.slane %v658, 4
        %v660 = vadd.f32 %v658, %v659
        %v661 = vrot.slane %v660, 2
        %v662 = vadd.f32 %v660, %v661
        %v663 = vrot.slane %v662, 1
        %v664 = vadd.f32 %v662, %v663
        %v665 = vsel %vm216, %v642, 0.0
        %v666 = vrot.slane %v665, 4
        %v667 = vadd.f32 %v665, %v666
        %v668 = vrot.slane %v667, 2
        %v669 = vadd.f32 %v667, %v668
        %v670 = vrot.slane %v669, 1
        %v671 = vadd.f32 %v669, %v670
        %v672 = vsel %vm216, %v627, 0.0
        %v673 = vrot.slane %v672, 4
        %v674 = vadd.f32 %v672, %v673
        %v675 = vrot.slane %v674, 2
        %v676 = vadd.f32 %v674, %v675
        %v677 = vrot.slane %v676, 1
        %v678 = vadd.f32 %v676, %v677
        %v679 = vsel %vm216, %v643, 0.0
        %v680 = vrot.slane %v679, 4
        %v681 = vadd.f32 %v679, %v680
        %v682 = vrot.slane %v681, 2
        %v683 = vadd.f32 %v681, %v682
        %v684 = vrot.slane %v683, 1
        %v685 = vadd.f32 %v683, %v684
        %v686 = vsel %vm216, %v628, 0.0
        %v687 = vrot.slane %v686, 4
        %v688 = vadd.f32 %v686, %v687
        %v689 = vrot.slane %v688, 2
        %v690 = vadd.f32 %v688, %v689
        %v691 = vrot.slane %v690, 1
        %v692 = vadd.f32 %v690, %v691
        %v693 = vsel %vm216, %v644, 0.0
        %v694 = vrot.slane %v693, 4
        %v695 = vadd.f32 %v693, %v694
        %v696 = vrot.slane %v695, 2
        %v697 = vadd.f32 %v695, %v696
        %v698 = vrot.slane %v697, 1
        %v699 = vadd.f32 %v697, %v698
        %v700 = vsel %vm216, %v629, 0.0
        %v701 = vrot.slane %v700, 4
        %v702 = vadd.f32 %v700, %v701
        %v703 = vrot.slane %v702, 2
        %v704 = vadd.f32 %v702, %v703
        %v705 = vrot.slane %v704, 1
        %v706 = vadd.f32 %v704, %v705
        %v707 = vsel %vm216, %v645, 0.0
        %v708 = vrot.slane %v707, 4
        %v709 = vadd.f32 %v707, %v708
        %v710 = vrot.slane %v709, 2
        %v711 = vadd.f32 %v709, %v710
        %v712 = vrot.slane %v711, 1
        %v713 = vadd.f32 %v711, %v712
        %v714 = vsel %vm216, %v630, 0.0
        %v715 = vrot.slane %v714, 4
        %v716 = vadd.f32 %v714, %v715
        %v717 = vrot.slane %v716, 2
        %v718 = vadd.f32 %v716, %v717
        %v719 = vrot.slane %v718, 1
        %v720 = vadd.f32 %v718, %v719
        %v721 = vsel %vm216, %v646, 0.0
        %v722 = vrot.slane %v721, 4
        %v723 = vadd.f32 %v721, %v722
        %v724 = vrot.slane %v723, 2
        %v725 = vadd.f32 %v723, %v724
        %v726 = vrot.slane %v725, 1
        %v727 = vadd.f32 %v725, %v726
        %v728 = vsel %vm216, %v631, 0.0
        %v729 = vrot.slane %v728, 4
        %v730 = vadd.f32 %v728, %v729
        %v731 = vrot.slane %v730, 2
        %v732 = vadd.f32 %v730, %v731
        %v733 = vrot.slane %v732, 1
        %v734 = vadd.f32 %v732, %v733
        %v735 = vsel %vm216, %v647, 0.0
        %v736 = vrot.slane %v735, 4
        %v737 = vadd.f32 %v735, %v736
        %v738 = vrot.slane %v737, 2
        %v739 = vadd.f32 %v737, %v738
        %v740 = vrot.slane %v739, 1
        %v741 = vadd.f32 %v739, %v740
        %v742 = vsel %vm216, %v632, 0.0
        %v743 = vrot.slane %v742, 4
        %v744 = vadd.f32 %v742, %v743
        %v745 = vrot.slane %v744, 2
        %v746 = vadd.f32 %v744, %v745
        %v747 = vrot.slane %v746, 1
        %v748 = vadd.f32 %v746, %v747
        %v749 = vsel %vm216, %v648, 0.0
        %v750 = vrot.slane %v749, 4
        %v751 = vadd.f32 %v749, %v750
        %v752 = vrot.slane %v751, 2
        %v753 = vadd.f32 %v751, %v752
        %v754 = vrot.slane %v753, 1
        %v755 = vadd.f32 %v753, %v754
        %v756 = vsel %vm216, %v633, 0.0
        %v757 = vrot.slane %v756, 4
        %v758 = vadd.f32 %v756, %v757
        %v759 = vrot.slane %v758, 2
        %v760 = vadd.f32 %v758, %v759
        %v761 = vrot.slane %v760, 1
        %v762 = vadd.f32 %v760, %v761
        %v763 = vsel %vm216, %v649, 0.0
        %v764 = vrot.slane %v763, 4
        %v765 = vadd.f32 %v763, %v764
        %v766 = vrot.slane %v765, 2
        %v767 = vadd.f32 %v765, %v766
        %v768 = vrot.slane %v767, 1
        %v769 = vadd.f32 %v767, %v768
        %v770 = vmul.f32 %v664, 0.25
        %v771 = vmul.f32 %v671, 0.25
        %v772 = vmul.f32 %v678, 0.25
        %v773 = vmul.f32 %v685, 0.25
        %v774 = vmul.f32 %v692, 0.25
        %v775 = vmul.f32 %v699, 0.25
        %v776 = vmul.f32 %v706, 0.25
        %v777 = vmul.f32 %v713, 0.25
        %v778 = vmul.f32 %v720, 0.25
        %v779 = vmul.f32 %v727, 0.25
        %v780 = vmul.f32 %v734, 0.25
        %v781 = vmul.f32 %v741, 0.25
        %v782 = vmul.f32 %v748, 0.25
        %v783 = vmul.f32 %v755, 0.25
        %v784 = vmul.f32 %v762, 0.25
        %v785 = vmul.f32 %v769, 0.25
        %v802 = vcombine.low %v770, %v771
        %v803 = vcombine.low %v772, %v773
        %v804 = vcombine.low %v774, %v775
        %v805 = vcombine.low %v776, %v777
        %v806 = vcombine.low %v778, %v779
        %v807 = vcombine.low %v780, %v781
        %v808 = vcombine.low %v782, %v783
        %v809 = vcombine.low %v784, %v785
        %v818 = vsub.f32 %v626, %v802
        %v819 = vsub.f32 %v627, %v803
        %v820 = vsub.f32 %v628, %v804
        %v821 = vsub.f32 %v629, %v805
        %v822 = vsub.f32 %v630, %v806
        %v823 = vsub.f32 %v631, %v807
        %v824 = vsub.f32 %v632, %v808
        %v825 = vsub.f32 %v633, %v809
        %v826 = vmul.f32 %v818, %v818
        %v827 = vmul.f32 %v819, %v819
        %v828 = vmul.f32 %v820, %v820
        %v829 = vmul.f32 %v821, %v821
        %v830 = vmul.f32 %v822, %v822
        %v831 = vmul.f32 %v823, %v823
        %v832 = vmul.f32 %v824, %v824
        %v833 = vmul.f32 %v825, %v825
        %v842 = vcombine.high %v826, %v826
        %v843 = vcombine.high %v827, %v827
        %v844 = vcombine.high %v828, %v828
        %v845 = vcombine.high %v829, %v829
        %v846 = vcombine.high %v830, %v830
        %v847 = vcombine.high %v831, %v831
        %v848 = vcombine.high %v832, %v832
        %v849 = vcombine.high %v833, %v833
        %v858 = vsel %vm216, %v826, 0.0
        %v859 = vrot.slane %v858, 4
        %v860 = vadd.f32 %v858, %v859
        %v861 = vrot.slane %v860, 2
        %v862 = vadd.f32 %v860, %v861
        %v863 = vrot.slane %v862, 1
        %v864 = vadd.f32 %v862, %v863
        %v865 = vsel %vm216, %v842, 0.0
        %v866 = vrot.slane %v865, 4
        %v867 = vadd.f32 %v865, %v866
        %v868 = vrot.slane %v867, 2
        %v869 = vadd.f32 %v867, %v868
        %v870 = vrot.slane %v869, 1
        %v871 = vadd.f32 %v869, %v870
        %v872 = vsel %vm216, %v827, 0.0
        %v873 = vrot.slane %v872, 4
        %v874 = vadd.f32 %v872, %v873
        %v875 = vrot.slane %v874, 2
        %v876 = vadd.f32 %v874, %v875
        %v877 = vrot.slane %v876, 1
        %v878 = vadd.f32 %v876, %v877
        %v879 = vsel %vm216, %v843, 0.0
        %v880 = vrot.slane %v879, 4
        %v881 = vadd.f32 %v879, %v880
        %v882 = vrot.slane %v881, 2
        %v883 = vadd.f32 %v881, %v882
        %v884 = vrot.slane %v883, 1
        %v885 = vadd.f32 %v883, %v884
        %v886 = vsel %vm216, %v828, 0.0
        %v887 = vrot.slane %v886, 4
        %v888 = vadd.f32 %v886, %v887
        %v889 = vrot.slane %v888, 2
        %v890 = vadd.f32 %v888, %v889
        %v891 = vrot.slane %v890, 1
        %v892 = vadd.f32 %v890, %v891
        %v893 = vsel %vm216, %v844, 0.0
        %v894 = vrot.slane %v893, 4
        %v895 = vadd.f32 %v893, %v894
        %v896 = vrot.slane %v895, 2
        %v897 = vadd.f32 %v895, %v896
        %v898 = vrot.slane %v897, 1
        %v899 = vadd.f32 %v897, %v898
        %v900 = vsel %vm216, %v829, 0.0
        %v901 = vrot.slane %v900, 4
        %v902 = vadd.f32 %v900, %v901
        %v903 = vrot.slane %v902, 2
        %v904 = vadd.f32 %v902, %v903
        %v905 = vrot.slane %v904, 1
        %v906 = vadd.f32 %v904, %v905
        %v907 = vsel %vm216, %v845, 0.0
        %v908 = vrot.slane %v907, 4
        %v909 = vadd.f32 %v907, %v908
        %v910 = vrot.slane %v909, 2
        %v911 = vadd.f32 %v909, %v910
        %v912 = vrot.slane %v911, 1
        %v913 = vadd.f32 %v911, %v912
        %v914 = vsel %vm216, %v830, 0.0
        %v915 = vrot.slane %v914, 4
        %v916 = vadd.f32 %v914, %v915
        %v917 = vrot.slane %v916, 2
        %v918 = vadd.f32 %v916, %v917
        %v919 = vrot.slane %v918, 1
        %v920 = vadd.f32 %v918, %v919
        %v921 = vsel %vm216, %v846, 0.0
        %v922 = vrot.slane %v921, 4
        %v923 = vadd.f32 %v921, %v922
        %v924 = vrot.slane %v923, 2
        %v925 = vadd.f32 %v923, %v924
        %v926 = vrot.slane %v925, 1
        %v927 = vadd.f32 %v925, %v926
        %v928 = vsel %vm216, %v831, 0.0
        %v929 = vrot.slane %v928, 4
        %v930 = vadd.f32 %v928, %v929
        %v931 = vrot.slane %v930, 2
        %v932 = vadd.f32 %v930, %v931
        %v933 = vrot.slane %v932, 1
        %v934 = vadd.f32 %v932, %v933
        %v935 = vsel %vm216, %v847, 0.0
        %v936 = vrot.slane %v935, 4
        %v937 = vadd.f32 %v935, %v936
        %v938 = vrot.slane %v937, 2
        %v939 = vadd.f32 %v937, %v938
        %v940 = vrot.slane %v939, 1
        %v941 = vadd.f32 %v939, %v940
        %v942 = vsel %vm216, %v832, 0.0
        %v943 = vrot.slane %v942, 4
        %v944 = vadd.f32 %v942, %v943
        %v945 = vrot.slane %v944, 2
        %v946 = vadd.f32 %v944, %v945
        %v947 = vrot.slane %v946, 1
        %v948 = vadd.f32 %v946, %v947
        %v949 = vsel %vm216, %v848, 0.0
        %v950 = vrot.slane %v949, 4
        %v951 = vadd.f32 %v949, %v950
        %v952 = vrot.slane %v951, 2
        %v953 = vadd.f32 %v951, %v952
        %v954 = vrot.slane %v953, 1
        %v955 = vadd.f32 %v953, %v954
        %v956 = vsel %vm216, %v833, 0.0
        %v957 = vrot.slane %v956, 4
        %v958 = vadd.f32 %v956, %v957
        %v959 = vrot.slane %v958, 2
        %v960 = vadd.f32 %v958, %v959
        %v961 = vrot.slane %v960, 1
        %v962 = vadd.f32 %v960, %v961
        %v963 = vsel %vm216, %v849, 0.0
        %v964 = vrot.slane %v963, 4
        %v965 = vadd.f32 %v963, %v964
        %v966 = vrot.slane %v965, 2
        %v967 = vadd.f32 %v965, %v966
        %v968 = vrot.slane %v967, 1
        %v969 = vadd.f32 %v967, %v968
        %v970 = vmul.f32 %v864, 0.25
        %v971 = vmul.f32 %v871, 0.25
        %v972 = vmul.f32 %v878, 0.25
        %v973 = vmul.f32 %v885, 0.25
        %v974 = vmul.f32 %v892, 0.25
        %v975 = vmul.f32 %v899, 0.25
        %v976 = vmul.f32 %v906, 0.25
        %v977 = vmul.f32 %v913, 0.25
        %v978 = vmul.f32 %v920, 0.25
        %v979 = vmul.f32 %v927, 0.25
        %v980 = vmul.f32 %v934, 0.25
        %v981 = vmul.f32 %v941, 0.25
        %v982 = vmul.f32 %v948, 0.25
        %v983 = vmul.f32 %v955, 0.25
        %v984 = vmul.f32 %v962, 0.25
        %v985 = vmul.f32 %v969, 0.25
        %v986 = vadd.f32 %v970, 1e-05
        %v987 = vadd.f32 %v971, 1e-05
        %v988 = vadd.f32 %v972, 1e-05
        %v989 = vadd.f32 %v973, 1e-05
        %v990 = vadd.f32 %v974, 1e-05
        %v991 = vadd.f32 %v975, 1e-05
        %v992 = vadd.f32 %v976, 1e-05
        %v993 = vadd.f32 %v977, 1e-05
        %v994 = vadd.f32 %v978, 1e-05
        %v995 = vadd.f32 %v979, 1e-05
        %v996 = vadd.f32 %v980, 1e-05
        %v997 = vadd.f32 %v981, 1e-05
        %v998 = vadd.f32 %v982, 1e-05
        %v999 = vadd.f32 %v983, 1e-05
        %v1000 = vadd.f32 %v984, 1e-05
        %v1001 = vadd.f32 %v985, 1e-05
        %v1002 = vrsqrt.pop %v986
        %v1003 = vrsqrt.pop %v987
        %v1004 = vrsqrt.pop %v988
        %v1005 = vrsqrt.pop %v989
        %v1006 = vrsqrt.pop %v990
        %v1007 = vrsqrt.pop %v991
        %v1008 = vrsqrt.pop %v992
        %v1009 = vrsqrt.pop %v993
        %v1010 = vrsqrt.pop %v994
        %v1011 = vrsqrt.pop %v995
        %v1012 = vrsqrt.pop %v996
        %v1013 = vrsqrt.pop %v997
        %v1014 = vrsqrt.pop %v998
        %v1015 = vrsqrt.pop %v999
        %v1016 = vrsqrt.pop %v1000
        %v1017 = vrsqrt.pop %v1001
        %v1034 = vcombine.low %v1002, %v1003
        %v1035 = vcombine.low %v1004, %v1005
        %v1036 = vcombine.low %v1006, %v1007
        %v1037 = vcombine.low %v1008, %v1009
        %v1038 = vcombine.low %v1010, %v1011
        %v1039 = vcombine.low %v1012, %v1013
        %v1040 = vcombine.low %v1014, %v1015
        %v1041 = vcombine.low %v1016, %v1017
        %v1050 = vmul.f32 %v818, %v1034
        %v1051 = vmul.f32 %v819, %v1035
        %v1052 = vmul.f32 %v820, %v1036
        %v1053 = vmul.f32 %v821, %v1037
        %v1054 = vmul.f32 %v822, %v1038
        %v1055 = vmul.f32 %v823, %v1039
        %v1056 = vmul.f32 %v824, %v1040
        %v1057 = vmul.f32 %v825, %v1041
        %s1058 = scalar_lea.vmem %s179, 32 [#allocation3]
        %1059 = vst [vmem:[%s1058] sm:$0xff] %v1050
        %1060 = vst [vmem:[%s1058 + $0x8] sm:$0xff] %v1051
        %1061 = vst [vmem:[%s1058 + $0x10] sm:$0xff] %v1052
        %1062 = vst [vmem:[%s1058 + $0x18] sm:$0xff] %v1053
        %1063 = vst [vmem:[%s1058 + $0x40] sm:$0xff] %v1054
        %1064 = vst [vmem:[%s1058 + $0x48] sm:$0xff] %v1055
        %1065 = vst [vmem:[%s1058 + $0x50] sm:$0xff] %v1056
        %1066 = vst [vmem:[%s1058 + $0x58] sm:$0xff] %v1057
        %s1067 = sand.u32 %s62, 1
        %s1068 = sand.u32 %s62, 1
        %s1069 = smul.addr %s1068, 128
        %s1070 = scalar_lea.vmem [#allocation3], %s1069
        // Predicated region
        $region48: #{channelwise_layer_norm.1} parent=42 // pred_check
          %p1071 = pneg %p72
        $region49: #{channelwise_layer_norm.1} parent=42 // pred_check_branch
          %1073 = sbr.rel (%p1071) target = $region51
        $region50: #{channelwise_layer_norm.1} parent=42 // pred_region
          %s1074 = smul.u32 2, %s16
          %s1075 = smul.u32 16, %s17
          %s1076 = smul.addr %s1074, 32
          %s1077 = sadd.s32 %s1075, %s1076
          %s1078 = smul.addr %s1077, 4
          %s1079 = scalar_lea.vmem %s1, %s1078
          // Predicated region
          $region52: #{channelwise_layer_norm.1} parent=50 // pred_check
            _
          $region53: #{channelwise_layer_norm.1} parent=50 // pred_check_branch
            %1081 = sbr.rel (0) target = $region55
          $region54: #{channelwise_layer_norm.1} parent=50 // pred_region
            // Predicated region
            $region56: #{channelwise_layer_norm.1} parent=54 // pred_check
              _
            $region57: #{channelwise_layer_norm.1} parent=54 // pred_check_branch
              %1083 = sbr.rel (0) target = $region59
            $region58: #{channelwise_layer_norm.1} parent=54 // pred_region
              loop: start=0, step=1, limit=1
              $region60: #{channelwise_layer_norm.1} parent=58 // loop_pre_header
                _
              $region61: #{channelwise_layer_norm.1} parent=58 // loop_header
                %s1085 = sphi 0, %s1089
                %p1086 = scmp.ge.s32.totalorder %s1085, 1
                %s1090 = sphi %s1070, %s1070
                %s1091 = sphi %s1079, %s1079
              $region62: #{channelwise_layer_norm.1} parent=58 // loop_header_branch
                %1088 = sbr.rel (%p1086) target = $region66
              $region63: #{channelwise_layer_norm.1} parent=58 // loop_body
                %v1092 = vld [vmem:[%s1090] sm:$0xff]
                %1093 = vst [vmem:[%s1091] sm:$0xff] %v1092
                %v1094 = vld [vmem:[%s1090 + $0x8] sm:$0xff]
                %1095 = vst [vmem:[%s1091 + $0x8] sm:$0xff] %v1094
                %v1096 = vld [vmem:[%s1090 + $0x10] sm:$0xff]
                %1097 = vst [vmem:[%s1091 + $0x10] sm:$0xff] %v1096
                %v1098 = vld [vmem:[%s1090 + $0x18] sm:$0xff]
                %1099 = vst [vmem:[%s1091 + $0x18] sm:$0xff] %v1098
                %v1100 = vld [vmem:[%s1090 + $0x20] sm:$0xff]
                %1101 = vst [vmem:[%s1091 + $0x20] sm:$0xff] %v1100
                %v1102 = vld [vmem:[%s1090 + $0x28] sm:$0xff]
                %1103 = vst [vmem:[%s1091 + $0x28] sm:$0xff] %v1102
                %v1104 = vld [vmem:[%s1090 + $0x30] sm:$0xff]
                %1105 = vst [vmem:[%s1091 + $0x30] sm:$0xff] %v1104
                %v1106 = vld [vmem:[%s1090 + $0x38] sm:$0xff]
                %1107 = vst [vmem:[%s1091 + $0x38] sm:$0xff] %v1106
                %v1108 = vld [vmem:[%s1090 + $0x40] sm:$0xff]
                %1109 = vst [vmem:[%s1091 + $0x80] sm:$0xff] %v1108
                %v1110 = vld [vmem:[%s1090 + $0x48] sm:$0xff]
                %1111 = vst [vmem:[%s1091 + $0x88] sm:$0xff] %v1110
                %v1112 = vld [vmem:[%s1090 + $0x50] sm:$0xff]
                %1113 = vst [vmem:[%s1091 + $0x90] sm:$0xff] %v1112
                %v1114 = vld [vmem:[%s1090 + $0x58] sm:$0xff]
                %1115 = vst [vmem:[%s1091 + $0x98] sm:$0xff] %v1114
                %v1116 = vld [vmem:[%s1090 + $0x60] sm:$0xff]
                %1117 = vst [vmem:[%s1091 + $0xa0] sm:$0xff] %v1116
                %v1118 = vld [vmem:[%s1090 + $0x68] sm:$0xff]
                %1119 = vst [vmem:[%s1091 + $0xa8] sm:$0xff] %v1118
                %v1120 = vld [vmem:[%s1090 + $0x70] sm:$0xff]
                %1121 = vst [vmem:[%s1091 + $0xb0] sm:$0xff] %v1120
                %v1122 = vld [vmem:[%s1090 + $0x78] sm:$0xff]
                %1123 = vst [vmem:[%s1091 + $0xb8] sm:$0xff] %v1122
              $region64: #{channelwise_layer_norm.1} parent=58 // loop_footer
                %s1089 = sadd.s32 1, %s1085
              $region65: #{channelwise_layer_norm.1} parent=58 // loop_footer_branch
                %1084 = sbr.rel target = $region61
              $region66: #{channelwise_layer_norm.1} parent=58 // loop_exit
                _
            $region59: #{channelwise_layer_norm.1} parent=54 // pred_fallthru
              _
            // Predicated region
            $region67: #{channelwise_layer_norm.1} parent=54 // pred_check
              _
            $region68: #{channelwise_layer_norm.1} parent=54 // pred_check_branch
              %1125 = sbr.rel target = $region70
            $region69: #{channelwise_layer_norm.1} parent=54 // pred_region
              _
            $region70: #{channelwise_layer_norm.1} parent=54 // pred_fallthru
              _
          $region55: #{channelwise_layer_norm.1} parent=50 // pred_fallthru
            _
          %1126 = vnop
        $region51: #{channelwise_layer_norm.1} parent=42 // pred_fallthru
          _
      $region43: #{channelwise_layer_norm.1} parent=5 // pred_fallthru
        _
      %p1127 = scmp.le.s32.totalorder 2, %s7
      // Predicated region
      $region71: #{channelwise_layer_norm.1} parent=5 // pred_check
        %p1128 = pneg %p1127
      $region72: #{channelwise_layer_norm.1} parent=5 // pred_check_branch
        %1130 = sbr.rel (%p1128) target = $region74
      $region73: #{channelwise_layer_norm.1} parent=5 // pred_region
        %s1131 = ssub.s32 %s7, 2
        // Predicated region
        $region75: #{channelwise_layer_norm.1} parent=73 // pred_check
          %p1132 = pneg %p78
        $region76: #{channelwise_layer_norm.1} parent=73 // pred_check_branch
          %1134 = sbr.rel (%p1132) target = $region78
        $region77: #{channelwise_layer_norm.1} parent=73 // pred_region
          %s1135 = sand.u32 %s63, 1
          %s1136 = sand.u32 %s63, 1
          %s1137 = smul.addr %s1136, 128
          %s1138 = scalar_lea.vmem [#allocation3], %s1137
        $region78: #{channelwise_layer_norm.1} parent=73 // pred_fallthru
          _
      $region74: #{channelwise_layer_norm.1} parent=5 // pred_fallthru
        _
    $region6: #{channelwise_layer_norm.1} parent=1 // loop_footer
      %s11 = sadd.s32 1, %s7
    $region7: #{channelwise_layer_norm.1} parent=1 // loop_footer_branch
      %6 = sbr.rel target = $region3
    $region8: #{channelwise_layer_norm.1} parent=1 // loop_exit
      _

</llo_original>
